<compile_context>
chip_gen: v7x
topology: tpu7x:2x2x1
jax: 0.10.0
libtpu: 0.0.40
codegen_flags: <defaults>
</compile_context>

<pallas_src>
import functools

import jax
import jax.numpy as jnp
from jax import lax
from jax.experimental import pallas as pl
from jax.experimental.pallas import tpu as pltpu

DT = jnp.bfloat16            # storage / matmul dtype (MXU bf16 peak on v5e/v6e/v7x)
EPS = 1e-5
VMEM_LIMIT = 64 * 1024 * 1024


def _cparams(*sem):
    return pltpu.CompilerParams(dimension_semantics=sem, vmem_limit_bytes=VMEM_LIMIT)


def _pick_tile(dim, target):
    # Largest clean tile: full dim when small (or not divisible), else the MXU-friendly target.
    # TODO(synk): production dims (e.g. 3+3840=3843) should be padded to 128-multiples so
    # tiling always triggers; at the small test shapes everything fits in a single block.
    if dim <= target or dim % target != 0:
        return dim
    return target


def _group_mask(C, groups):
    cg = C // groups
    return (jnp.arange(groups)[:, None] == (jnp.arange(C)[None, :] // cg)).astype(jnp.float32)


# ----------------------------- in-kernel GroupNorm(+ReLU) helper -------------

def _gn_relu(x, gamma, beta, mask, eps, inv_n):
    """GroupNorm over (V, group-channels) + ReLU. x: (V, C) f32, mask: (G, C) one-hot.

    VPU/XLU only (no 1-row MXU matmuls); two-pass variance (subtract mean first)."""
    col_sum = jnp.sum(x, axis=0, keepdims=True)                       # (1, C)
    grp_sum = jnp.sum(mask * col_sum, axis=1, keepdims=True)          # (G, 1)
    mean_c = jnp.sum(mask * (grp_sum * inv_n), axis=0, keepdims=True)  # (1, C)
    d = x - mean_c
    col_sq = jnp.sum(d * d, axis=0, keepdims=True)                    # (1, C)
    grp_sq = jnp.sum(mask * col_sq, axis=1, keepdims=True)            # (G, 1)
    inv_c = jnp.sum(mask * lax.rsqrt(grp_sq * inv_n + eps), axis=0, keepdims=True)  # (1, C)
    y = d * inv_c * gamma + beta
    return jnp.maximum(y, 0.0)


# ----------------------------- Pallas kernels --------------------------------

def _gn_mm_kernel(x_ref, g_ref, b_ref, m_ref, w_ref, bias_ref, o_ref, *, eps, inv_n):
    # GN+ReLU prologue, then (V, Cin) @ (Cin, tn) + bias.
    xn = _gn_relu(x_ref[...].astype(jnp.float32), g_ref[...], b_ref[...], m_ref[...], eps, inv_n)
    y = jnp.dot(xn.astype(w_ref.dtype), w_ref[...], preferred_element_type=jnp.float32)
    o_ref[...] = (y + bias_ref[...]).astype(o_ref.dtype)


def _gn_mm_res_kernel(x_ref, g_ref, b_ref, m_ref, w_ref, bias_ref, r_ref, o_ref, *, eps, inv_n):
    # GN+ReLU prologue, matmul + bias + residual (fused res-block tail).
    xn = _gn_relu(x_ref[...].astype(jnp.float32), g_ref[...], b_ref[...], m_ref[...], eps, inv_n)
    y = jnp.dot(xn.astype(w_ref.dtype), w_ref[...], preferred_element_type=jnp.float32)
    o_ref[...] = (y + bias_ref[...] + r_ref[...].astype(jnp.float32)).astype(o_ref.dtype)


def _gn_conv_kernel(x_ref, g_ref, b_ref, m_ref, w_ref, a_ref, cb_ref, o_ref, *, eps, inv_n):
    # GN+ReLU prologue, then the fused GraphConvolution pair:
    #   support = xn @ W ; out = A @ support + bias   (two back-to-back MXU matmuls,
    #   intermediate stays in VMEM -> no (B, V, mid) HBM round trip).
    xn = _gn_relu(x_ref[...].astype(jnp.float32), g_ref[...], b_ref[...], m_ref[...], eps, inv_n)
    support = jnp.dot(xn.astype(w_ref.dtype), w_ref[...], preferred_element_type=jnp.float32)
    y = jnp.dot(a_ref[...], support.astype(a_ref.dtype), preferred_element_type=jnp.float32)
    o_ref[...] = (y + cb_ref[...]).astype(o_ref.dtype)


def _gn_mm_t_kernel(x_ref, g_ref, b_ref, m_ref, w_ref, bias_ref, o_ref, *, eps, inv_n, relu_out):
    # GN+ReLU prologue, narrow projection (Cout in {1,3}), output stored transposed as
    # (Cout, V) so the lane axis is the (large) vertex axis -> dense stores.
    xn = _gn_relu(x_ref[...].astype(jnp.float32), g_ref[...], b_ref[...], m_ref[...], eps, inv_n)
    y = jnp.dot(xn.astype(w_ref.dtype), w_ref[...], preferred_element_type=jnp.float32) + bias_ref[...]
    if relu_out:
        y = jnp.maximum(y, 0.0)
    o_ref[...] = y.T.astype(o_ref.dtype)          # (Cout, V) lane-dense


def _mm_bias_kernel(x_ref, w_ref, b_ref, o_ref, acc_ref, *, relu):
    # Tiled (M,K)@(K,N): batch folded into M, f32 accumulator, K innermost.
    @pl.when(pl.program_id(2) == 0)
    def _():
        acc_ref[...] = jnp.zeros_like(acc_ref)

    acc_ref[...] += jnp.dot(x_ref[...], w_ref[...], preferred_element_type=jnp.float32)

    @pl.when(pl.program_id(2) == pl.num_programs(2) - 1)
    def _():
        y = acc_ref[...] + b_ref[...]
        if relu:
            y = jnp.maximum(y, 0.0)
        o_ref[...] = y.astype(o_ref.dtype)


def _left_mm_kernel(a_ref, x_ref, o_ref):
    # a: (tvout, Vin) shared across batch, x: (Vin, tc) -> (tvout, tc)
    o_ref[...] = jnp.dot(a_ref[...], x_ref[...], preferred_element_type=jnp.float32).astype(o_ref.dtype)


# ----------------------------- pallas_call wrappers --------------------------

def gn_linear(x, gamma, beta, groups, w, b, residual=None, tn_target=256):
    """y = GN(x)+ReLU ; out = y @ w + b (+ residual).  x: (B, V, Cin) -> (B, V, Cout)."""
    B, V, Cin = x.shape
    Cout = w.shape[1]
    tn = _pick_tile(Cout, tn_target)
    nt = Cout // tn
    mask = _group_mask(Cin, groups)
    inv_n = 1.0 / float(V * (Cin // groups))
    kernel = _gn_mm_kernel if residual is None else _gn_mm_res_kernel
    in_specs = [pl.BlockSpec((None, V, Cin), lambda bb, j: (bb, 0, 0)),
                pl.BlockSpec((1, Cin), lambda bb, j: (0, 0)),
                pl.BlockSpec((1, Cin), lambda bb, j: (0, 0)),
                pl.BlockSpec((groups, Cin), lambda bb, j: (0, 0)),
                pl.BlockSpec((Cin, tn), lambda bb, j: (0, j)),
                pl.BlockSpec((1, tn), lambda bb, j: (0, j))]
    args = [x, gamma.reshape(1, Cin), beta.reshape(1, Cin), mask, w, b.reshape(1, Cout)]
    if residual is not None:
        in_specs.append(pl.BlockSpec((None, V, tn), lambda bb, j: (bb, 0, j)))
        args.append(residual)
    return pl.pallas_call(
        functools.partial(kernel, eps=EPS, inv_n=inv_n),
        out_shape=jax.ShapeDtypeStruct((B, V, Cout), x.dtype),
        grid=(B, nt),
        in_specs=in_specs,
        out_specs=pl.BlockSpec((None, V, tn), lambda bb, j: (bb, 0, j)),
        compiler_params=_cparams("parallel", "parallel"),
    )(*args)


def gn_graph_conv(x, gamma, beta, groups, conv_w, conv_b, A):
    """Fused GN+ReLU -> GraphConvolution: A @ (GN(x) @ W) + b.  x: (B, V, C)."""
    B, V, C = x.shape
    mask = _group_mask(C, groups)
    inv_n = 1.0 / float(V * (C // groups))
    return pl.pallas_call(
        functools.partial(_gn_conv_kernel, eps=EPS, inv_n=inv_n),
        out_shape=jax.ShapeDtypeStruct((B, V, C), x.dtype),
        grid=(B,),
        in_specs=[pl.BlockSpec((None, V, C), lambda i: (i, 0, 0)),
                  pl.BlockSpec((1, C), lambda i: (0, 0)),
                  pl.BlockSpec((1, C), lambda i: (0, 0)),
                  pl.BlockSpec((groups, C), lambda i: (0, 0)),
                  pl.BlockSpec((C, C), lambda i: (0, 0)),
                  pl.BlockSpec((V, V), lambda i: (0, 0)),
                  pl.BlockSpec((1, C), lambda i: (0, 0))],
        out_specs=pl.BlockSpec((None, V, C), lambda i: (i, 0, 0)),
        compiler_params=_cparams("parallel"),
    )(x, gamma.reshape(1, C), beta.reshape(1, C), mask, conv_w,
      A.astype(x.dtype), conv_b.reshape(1, C))


def gn_linear_T(x, gamma, beta, groups, w, b, *, relu_out):
    """GN+ReLU -> narrow GraphLinear, output directly in channel-first (B, Cout, V)."""
    B, V, C = x.shape
    Cout = w.shape[1]
    mask = _group_mask(C, groups)
    inv_n = 1.0 / float(V * (C // groups))
    return pl.pallas_call(
        functools.partial(_gn_mm_t_kernel, eps=EPS, inv_n=inv_n, relu_out=relu_out),
        out_shape=jax.ShapeDtypeStruct((B, Cout, V), jnp.float32),
        grid=(B,),
        in_specs=[pl.BlockSpec((None, V, C), lambda i: (i, 0, 0)),
                  pl.BlockSpec((1, C), lambda i: (0, 0)),
                  pl.BlockSpec((1, C), lambda i: (0, 0)),
                  pl.BlockSpec((groups, C), lambda i: (0, 0)),
                  pl.BlockSpec((C, Cout), lambda i: (0, 0)),
                  pl.BlockSpec((1, Cout), lambda i: (0, 0))],
        out_specs=pl.BlockSpec((None, Cout, V), lambda i: (i, 0, 0)),
        compiler_params=_cparams("parallel"),
    )(x, gamma.reshape(1, C), beta.reshape(1, C), mask, w, b.reshape(1, Cout))


def matmul_bias(x, w, b, *, relu=False, tm_t=256, tn_t=256, tk_t=512):
    """(M, K) @ (K, N) + b, batch folded into M, tiled with f32 accumulator."""
    M, K = x.shape
    N = w.shape[1]
    tm, tn, tk = _pick_tile(M, tm_t), _pick_tile(N, tn_t), _pick_tile(K, tk_t)
    return pl.pallas_call(
        functools.partial(_mm_bias_kernel, relu=relu),
        out_shape=jax.ShapeDtypeStruct((M, N), x.dtype),
        grid=(M // tm, N // tn, K // tk),
        in_specs=[pl.BlockSpec((tm, tk), lambda i, j, k: (i, k)),
                  pl.BlockSpec((tk, tn), lambda i, j, k: (k, j)),
                  pl.BlockSpec((1, tn), lambda i, j, k: (0, j))],
        out_specs=pl.BlockSpec((tm, tn), lambda i, j, k: (i, j)),
        scratch_shapes=[pltpu.VMEM((tm, tn), jnp.float32)],
        compiler_params=_cparams("parallel", "parallel", "arbitrary"),
    )(x, w, b.reshape(1, N))


def left_matmul(a, x, *, tm_t=512, tn_t=512):
    """a: (Vout, Vin) shared across batch, x: (B, Vin, C) -> (B, Vout, C), tiled Vout x C."""
    B, Vin, C = x.shape
    Vout = a.shape[0]
    a = a.astype(x.dtype)
    tm, tn = _pick_tile(Vout, tm_t), _pick_tile(C, tn_t)
    return pl.pallas_call(
        _left_mm_kernel,
        out_shape=jax.ShapeDtypeStruct((B, Vout, C), x.dtype),
        grid=(B, Vout // tm, C // tn),
        in_specs=[pl.BlockSpec((tm, Vin), lambda bb, i, j: (i, 0)),
                  pl.BlockSpec((None, Vin, tn), lambda bb, i, j: (bb, 0, j))],
        out_specs=pl.BlockSpec((None, tm, tn), lambda bb, i, j: (bb, i, j)),
        compiler_params=_cparams("parallel", "parallel", "parallel"),
    )(a, x)


# ----------------------------- module building blocks ------------------------

def graph_res_block(x, p, A):
    """GraphResBlock (pre-norm) in (B, V, C) layout — 3 fused kernels (+1 for projected skip)."""
    y = gn_linear(x, p['pre_g'], p['pre_b'], p['pre_groups'], p['lin1']['w'], p['lin1']['b'])
    y = gn_graph_conv(y, p['n1_g'], p['n1_b'], p['mid_groups'], p['conv_w'], p['conv_b'], A)
    if 'skip' in p:
        B, V, Cin = x.shape
        skip = matmul_bias(x.reshape(B * V, Cin), p['skip']['w'], p['skip']['b']).reshape(B, V, -1)
    else:
        skip = x
    return gn_linear(y, p['n2_g'], p['n2_b'], p['mid_groups'],
                     p['lin2']['w'], p['lin2']['b'], residual=skip)


def run_gc(x, p, A):
    B, V, Cin = x.shape
    x = matmul_bias(x.reshape(B * V, Cin), p['in_lin']['w'], p['in_lin']['b']).reshape(B, V, -1)
    for bp in p['blocks']:
        x = graph_res_block(x, bp, A)
    return x


def run_shape_head(x, p, A):
    x = graph_res_block(x, p['rb1'], A)
    x = graph_res_block(x, p['rb2'], A)
    # GroupNorm(4, 32) + ReLU + GraphLinear(32, 3), emitted directly as (B, 3, V) lane-dense.
    return gn_linear_T(x, p['gn_g'], p['gn_b'], 32 // 8, p['out']['w'], p['out']['b'],
                       relu_out=False)


def run_camera_head(x, p, num_channels, *, final_relu):
    # GN + ReLU + GraphLinear(C, 1) + ReLU fused, output (B, 1, V) lane-dense.
    y = gn_linear_T(x, p['gn_g'], p['gn_b'], num_channels // 8,
                    p['gl']['w'], p['gl']['b'], relu_out=True)[:, 0, :]   # (B, V)
    # Linear(V, 3): M=1/N=3 matmul -> plain XLA (Pallas adds only launch overhead here).
    cam = jnp.dot(y, p['lin']['w'].astype(jnp.float32)) + p['lin']['b']
    if final_relu:
        cam = jnp.maximum(cam, 0.0)
    return cam                                                            # (B, 3)


# ----------------------------- keypoint projection (plain JAX glue) ----------
# TODO(synk): the dynamic feature-map gather of bilinear_inter has no clean Pallas
# equivalent without a manual DMA gather; kept in plain JAX.

def _bilinear_inter(img_feature, kp_x, kp_y):
    H, W = img_feature.shape[1], img_feature.shape[2]
    x = jnp.clip(kp_x, 0.0, H - 1.0)
    y = jnp.clip(kp_y, 0.0, W - 1.0)
    x1 = jnp.floor(x).astype(jnp.int32)
    x2 = jnp.ceil(x).astype(jnp.int32)
    y1 = jnp.floor(y).astype(jnp.int32)
    y2 = jnp.ceil(y).astype(jnp.int32)
    Q11 = img_feature[:, x1, y1].T
    Q12 = img_feature[:, x1, y2].T
    Q21 = img_feature[:, x2, y1].T
    Q22 = img_feature[:, x2, y2].T
    w11 = ((x2.astype(jnp.float32) - x) * (y2.astype(jnp.float32) - y))[:, None]
    w12 = ((x2.astype(jnp.float32) - x) * (y - y1.astype(jnp.float32)))[:, None]
    w21 = ((x - x1.astype(jnp.float32)) * (y2.astype(jnp.float32) - y))[:, None]
    w22 = ((x - x1.astype(jnp.float32)) * (y - y1.astype(jnp.float32)))[:, None]
    return w11 * Q11 + w21 * Q21 + w12 * Q12 + w22 * Q22


def project(img_size, img_features, keypoint):
    H, W = img_features.shape[-2], img_features.shape[-1]
    kx = keypoint[:, :, 0] / (img_size / H)
    ky = keypoint[:, :, 1] / (img_size / W)
    return jax.vmap(_bilinear_inter)(img_features, kx, ky)


# ----------------------------- parameter construction ------------------------

def build_params(key, feat_in, C, num_layers, V1, V2):
    keys = iter(jax.random.split(key, 512))

    def nrm(shape, scale=0.05, dtype=DT):
        return (scale * jax.random.normal(next(keys), shape, dtype=jnp.float32)).astype(dtype)

    def gl_p(cin, cout):
        return {'w': nrm((cin, cout)), 'b': nrm((cout,), dtype=jnp.float32)}

    def rb_p(cin, cout):
        mid = cout // 2
        p = {'pre_g': jnp.ones((cin,), jnp.float32), 'pre_b': jnp.zeros((cin,), jnp.float32),
             'pre_groups': cin // 8,
             'lin1': gl_p(cin, mid),
             'n1_g': jnp.ones((mid,), jnp.float32), 'n1_b': jnp.zeros((mid,), jnp.float32),
             'conv_w': nrm((mid, mid)), 'conv_b': nrm((mid,), dtype=jnp.float32),
             'n2_g': jnp.ones((mid,), jnp.float32), 'n2_b': jnp.zeros((mid,), jnp.float32),
             'mid_groups': mid // 8,
             'lin2': gl_p(mid, cout)}
        if cin != cout:
            p['skip'] = gl_p(cin, cout)
        return p

    def gc_stack_p():
        return {'in_lin': gl_p(feat_in, 2 * C),
                'blocks': [rb_p(2 * C, C)] + [rb_p(C, C) for _ in range(num_layers)]}

    def shape_head_p():
        return {'rb1': rb_p(C, 64), 'rb2': rb_p(64, 32),
                'gn_g': jnp.ones((32,), jnp.float32), 'gn_b': jnp.zeros((32,), jnp.float32),
                'out': gl_p(32, 3)}

    def camera_head_p(V):
        return {'gn_g': jnp.ones((C,), jnp.float32), 'gn_b': jnp.zeros((C,), jnp.float32),
                'gl': gl_p(C, 1), 'lin': gl_p(V, 3)}

    return {'gc': gc_stack_p(), 'shape': shape_head_p(), 'cam': camera_head_p(V2),
            'gc1': gc_stack_p(), 'shape1': shape_head_p(), 'cam1': camera_head_p(V1),
            'cam_final': gl_p(6, 3)}


# ----------------------------- full forward ----------------------------------

def graph_cnn_forward(image, keypoints, image_resnet, smpl_w, D1, D2, U21,
                      ref_vertices, A1, A2, params, num_channels):
    B = image.shape[0]
    img_size = float(image.shape[-1])

    # keypoints in image coordinates (PyTorch hard-codes 224; we use the image size)
    keypoint = (keypoints[:, :, :2] + 1.0) * 0.5 * img_size

    # TODO(synk): image_resnet stands in for the pretrained resnet50 pyramid; cv2
    # visualisation in the PyTorch forward is display-only and omitted.
    img_feats = [project(img_size, f, keypoint) for f in image_resnet]
    cat_feature = jnp.concatenate(img_feats, axis=2).astype(DT)        # (B, K, F)

    att_features = left_matmul(smpl_w, cat_feature)                    # (B, V0, F)
    att1 = left_matmul(D1, att_features)                               # (B, V1, F)  (shared by both levels)
    att0 = left_matmul(D2, att1)                                       # (B, V2, F)

    vertices_0 = jnp.broadcast_to(ref_vertices[None].astype(DT), (B,) + ref_vertices.shape)
    x0 = jnp.concatenate([vertices_0, att0], axis=2)                   # (B, V2, 3+F)

    x = run_gc(x0, params['gc'], A2)                                   # (B, V2, C)
    shape_0 = run_shape_head(x, params['shape'], A2)                   # (B, 3, V2) channel-first
    camera_0 = run_camera_head(x, params['cam'], num_channels, final_relu=False)     # (B, 3)

    # level-1 branch
    vertices_1 = left_matmul(U21, jnp.transpose(shape_0, (0, 2, 1)))   # (B, V1, 3)
    x1 = jnp.concatenate([vertices_1.astype(DT), att1], axis=2)        # (B, V1, 3+F)

    x = run_gc(x1, params['gc1'], A1)                                  # (B, V1, C)
    shape_1 = run_shape_head(x, params['shape1'], A1)                  # (B, 3, V1) channel-first
    camera_1 = run_camera_head(x, params['cam1'], num_channels, final_relu=True)     # (B, 3)

    cam_in = jnp.concatenate([camera_0, camera_1], axis=1)             # (B, 6)
    # cam_final Linear(6, 3): tiny — plain XLA.
    camera = jnp.dot(cam_in, params['cam_final']['w'].astype(jnp.float32)) + params['cam_final']['b']

    return shape_1, camera                                             # (B, 3, V1), (B, 3)


# ----------------------------- driver -----------------------------------------

if __name__ == "__main__":
    B, K = 2, 24
    IMG = 32                       # scaled-down 224
    V0, V1, V2 = 64, 32, 16        # mesh levels (scaled-down 6890 / 1723 / 431)
    C = 32                         # num_channels (scaled-down 512)
    NUM_LAYERS = 2                 # scaled-down 5
    feat_channels = (13, 16, 16, 16)   # resnet pyramid channels, sum=61 -> 3+61=64 (scaled 3+3840)
    spatials = (16, 8, 8, 4)
    FEAT_IN = 3 + sum(feat_channels)

    key = jax.random.PRNGKey(0)
    k_img, k_kp, k_feat, k_smpl, k_mesh, k_ref, k_adj, k_par = jax.random.split(key, 8)

    image = jax.random.uniform(k_img, (B, 3, IMG, IMG), jnp.float32)
    keypoints = jax.random.uniform(k_kp, (B, K, 3), jnp.float32, -1.0, 1.0)

    # TODO(synk): pretrained resnet50 backbone, SMPL()/Mesh() asset loads and cv2 display
    # cannot be reproduced in a Pallas kernel; deterministic synthetic tensors stand in.
    fk = jax.random.split(k_feat, 4)
    image_resnet = [jax.random.normal(fk[i], (B, feat_channels[i], spatials[i], spatials[i]),
                                      jnp.float32) for i in range(4)]

    smpl_w = jax.nn.softmax(jax.random.normal(k_smpl, (V0, K), jnp.float32), axis=-1)
    mk = jax.random.split(k_mesh, 3)
    D1 = jax.nn.softmax(jax.random.normal(mk[0], (V1, V0), jnp.float32), axis=-1)   # lvl0 -> lvl1
    D2 = jax.nn.softmax(jax.random.normal(mk[1], (V2, V1), jnp.float32), axis=-1)   # lvl1 -> lvl2
    U21 = jax.nn.softmax(jax.random.normal(mk[2], (V1, V2), jnp.float32), axis=-1)  # lvl2 -> lvl1
    ref_vertices = 0.2 * jax.random.normal(k_ref, (V2, 3), jnp.float32)

    ak = jax.random.split(k_adj, 2)
    A1 = jax.nn.softmax(jax.random.normal(ak[0], (V1, V1), jnp.float32), axis=-1)
    A2 = jax.nn.softmax(jax.random.normal(ak[1], (V2, V2), jnp.float32), axis=-1)

    params = build_params(k_par, FEAT_IN, C, NUM_LAYERS, V1, V2)

    shape_1, camera = graph_cnn_forward(image, keypoints, image_resnet, smpl_w,
                                        D1, D2, U21, ref_vertices, A1, A2, params, C)
    jax.block_until_ready((shape_1, camera))

    assert shape_1.shape == (B, 3, V1), shape_1.shape
    assert camera.shape == (B, 3), camera.shape
    assert bool(jnp.all(jnp.isfinite(shape_1))) and bool(jnp.all(jnp.isfinite(camera)))
    print("KERNEL_OK")
</pallas_src>

<mosaic_0001>
module attributes {stable_mosaic.version = 11 : i64} {
  func.func @_left_mm_kernel(%arg0: i32, %arg1: i32, %arg2: i32, %arg3: memref<64x24xbf16, #tpu.memory_space<vmem>>, %arg4: memref<1x24x61xbf16, #tpu.memory_space<vmem>>, %arg5: memref<1x64x61xbf16, #tpu.memory_space<vmem>>) attributes {dimension_semantics = [#tpu.dimension_semantics<parallel>, #tpu.dimension_semantics<parallel>, #tpu.dimension_semantics<parallel>], iteration_bounds = array<i64: 2, 1, 1>, scalar_prefetch = 0 : i64, scratch_operands = 0 : i64, tpu.core_type = #tpu.core_type<tc>, window_params = [{transform_indices = @transform_0, window_bounds = array<i64: 64, 24>}, {transform_indices = @transform_1, window_bounds = array<i64: 1, 24, 61>}, {transform_indices = @transform_2, window_bounds = array<i64: 1, 64, 61>}]} {
    %c0 = arith.constant 0 : index
    %c0_0 = arith.constant 0 : index
    %0 = vector.load %arg3[%c0, %c0_0] : memref<64x24xbf16, #tpu.memory_space<vmem>>, vector<64x24xbf16>
    %c0_1 = arith.constant 0 : index
    %c0_2 = arith.constant 0 : index
    %c0_3 = arith.constant 0 : index
    %1 = vector.load %arg4[%c0_1, %c0_2, %c0_3] : memref<1x24x61xbf16, #tpu.memory_space<vmem>>, vector<1x24x61xbf16>
    %2 = vector.shape_cast %1 : vector<1x24x61xbf16> to vector<24x61xbf16>
    %cst = arith.constant dense<0.000000e+00> : vector<64x61xf32>
    %3 = tpu.matmul %0, %2, %cst {dimension_numbers = #tpu.dot_dimension_numbers<[1], [0], [0], [1], [0, 0, 1, 1], [], []>} : vector<64x24xbf16>, vector<24x61xbf16>, vector<64x61xf32> -> vector<64x61xf32>
    %4 = arith.truncf %3 : vector<64x61xf32> to vector<64x61xbf16>
    %c0_4 = arith.constant 0 : index
    %c0_5 = arith.constant 0 : index
    %c0_6 = arith.constant 0 : index
    %5 = vector.load %arg5[%c0_4, %c0_5, %c0_6] : memref<1x64x61xbf16, #tpu.memory_space<vmem>>, vector<1x64x61xbf16>
    %6 = vector.shape_cast %5 : vector<1x64x61xbf16> to vector<64x61xbf16>
    %7 = vector.shape_cast %4 : vector<64x61xbf16> to vector<1x64x61xbf16>
    tpu.vector_store %arg5[%c0_4, %c0_5, %c0_6], %7 {strides = array<i32>} : memref<1x64x61xbf16, #tpu.memory_space<vmem>>, vector<1x64x61xbf16>,
    return
  }
  func.func @transform_0(%arg0: i32, %arg1: i32, %arg2: i32) -> (i32, i32) {
    %c0_i32 = arith.constant 0 : i32
    %c0_i32_0 = arith.constant 0 : i32
    return %arg1, %c0_i32 : i32, i32
  }
  func.func @transform_1(%arg0: i32, %arg1: i32, %arg2: i32) -> (i32, i32, i32) {
    %c0_i32 = arith.constant 0 : i32
    %c0_i32_0 = arith.constant 0 : i32
    return %arg0, %c0_i32, %arg2 : i32, i32, i32
  }
  func.func @transform_2(%arg0: i32, %arg1: i32, %arg2: i32) -> (i32, i32, i32) {
    %c0_i32 = arith.constant 0 : i32
    return %arg0, %arg1, %arg2 : i32, i32, i32
  }
}

</mosaic_0001>

<llo_original>
// kernel: tpu_custom_call.1
$region0: #{tpu_custom_call.1}
  #allocation0 [shape = 'u32[]', space=smem, size = 0x4, offset = 0x4, fixed_abs, tag = 'smem constant byte address 0x4 - core index']
  #allocation1 [shape = 'u32[144,128]{1,0:T(1,128)}', space=vmem, size = 0x12000, scoped, tag = 'internal scratch']
  %s0 = inlined_call_operand.hbm [shape: bf16[64,24], index: 0, kind: input, shape index: {}]
  %s1 = inlined_call_operand.hbm [shape: bf16[2,24,61], index: 1, kind: input, shape index: {}]
  %s2 = inlined_call_operand.hbm [shape: bf16[2,64,61], index: 2, kind: output, shape index: {}]
  %s3 = sld [smem:[#allocation0]]
  $region49: #{tpu_custom_call.1} parent=0
    _
  %s5 = ssub.s32 1, %s3
  %s6 = scalar_select 0, %s5, %s3
  $region1: #{tpu_custom_call.1} parent=0
    #allocation2 [shape = 'u8[16384]{0}', space=vmem, size = 0x4000, scoped, tag = 'input window, operand 0, single buffered']
    #allocation3 [shape = 's32[2]{0}', space=sflag, size = 0x8, scoped, tag = 'scoped memory for tpu_custom_call.1']
    #allocation4 [shape = 's32[2]{0}', space=sflag, size = 0x8, scoped, tag = 'scoped memory for tpu_custom_call.1']
    #allocation5 [shape = 'u8[12288]{0}', space=vmem, size = 0x3000, scoped, tag = 'input window, operand 1']
    #allocation6 [shape = 's32[2]{0}', space=sflag, size = 0x8, scoped, tag = 'scoped memory for tpu_custom_call.1']
    #allocation7 [shape = 'u8[32768]{0}', space=vmem, size = 0x8000, scoped, tag = 'output window, operand 0']
    %7 = vsyncpa [#allocation3], 0
    %8 = vsyncpa [#allocation6], 0
    %s9 = scalar_lea.sflag [#allocation6], 1
    %10 = vsyncpa %s9, 0
    %11 = vsyncpa [#allocation4], 0
    %s12 = scalar_lea.sflag [#allocation4], 1
    %13 = vsyncpa %s12, 0
    loop: start=0, step=1, limit=4
    $region2: #{tpu_custom_call.1} parent=1 // loop_pre_header
      _
    $region3: #{tpu_custom_call.1} parent=1 // loop_header
      %s15 = sphi 0, %s19
      %p16 = scmp.ge.s32.totalorder %s15, 4
      %s22 = sphi 0, %s41
      %s23 = sphi 0, %s37
      %s24 = sphi 0, %s33
      %s25 = sphi 0, %s22
      %s26 = sphi 0, %s23
      %s27 = sphi 0, %s24
      %s28 = sphi 0, %s25
      %s29 = sphi 0, %s26
      %s30 = sphi 0, %s27
      %s44 = sphi 0, %s46
      %s47 = sphi 0, %s44
      %s48 = sphi 0, %s47
      %s64 = sphi 0, %s48
      %s72 = sphi 0, %s74
      %s75 = sphi 0, %s72
      %s76 = sphi 0, %s75
      %s92 = sphi 0, %s76
      %s102 = sphi 0, %s104
      %s105 = sphi 0, %s102
      %s106 = sphi 0, %s105
      %s122 = sphi 0, %s106
    $region4: #{tpu_custom_call.1} parent=1 // loop_header_branch
      %18 = sbr.rel (%p16) target = $region8
    $region5: #{tpu_custom_call.1} parent=1 // loop_body
      %s20 = ssub.s32 %s15, 1
      %s21 = ssub.s32 %s15, 2
      %s31 = sadd.s32 1, %s24
      %p32 = scmp.ge.s32.totalorder %s31, 1
      %s33 = scalar_select %p32, 0, %s31
      %s34 = sadd.s32 1, %s23
      %s35 = scalar_select %p32, %s34, %s23
      %p36 = scmp.ge.s32.totalorder %s35, 1
      %s37 = scalar_select %p36, 0, %s35
      %s38 = sadd.s32 1, %s22
      %s39 = scalar_select %p36, %s38, %s22
      %p40 = scmp.ge.s32.totalorder %s39, 2
      %s41 = scalar_select %p40, 0, %s39
      %s42 = ssub.s32 %s23, %s37
      %p43 = scmp.eq.s32.totalorder %s42, 0
      %s45 = sadd.s32 %s44, 1
      %s46 = scalar_select %p43, %s44, %s45
      %p49 = pneg %p43
      %p50 = scmp.eq.s32.totalorder %s15, 1
      %p51 = por %p49, %p50
      %p52 = scmp.ne.s32.totalorder %s44, %s47
      %p53 = scmp.eq.s32.totalorder %s15, 0
      %p54 = por %p52, %p53
      %p55 = scmp.ne.s32.totalorder %s44, %s47
      %p56 = scmp.eq.s32.totalorder %s20, 1
      %p57 = por %p55, %p56
      %p58 = scmp.ne.s32.totalorder %s47, %s48
      %p59 = scmp.eq.s32.totalorder %s20, 0
      %p60 = por %p58, %p59
      %p61 = scmp.ne.s32.totalorder %s47, %s48
      %p62 = scmp.eq.s32.totalorder %s21, 1
      %p63 = por %p61, %p62
      %p65 = scmp.ne.s32.totalorder %s48, %s64
      %p66 = scmp.eq.s32.totalorder %s21, 0
      %p67 = por %p65, %p66
      %s68 = ssub.s32 %s22, %s41
      %s69 = ssub.s32 %s24, %s33
      %s70 = sor.u32 %s68, %s69
      %p71 = scmp.eq.s32.totalorder %s70, 0
      %s73 = sadd.s32 %s72, 1
      %s74 = scalar_select %p71, %s72, %s73
      %p77 = pneg %p71
      %p78 = scmp.eq.s32.totalorder %s15, 1
      %p79 = por %p77, %p78
      %p80 = scmp.ne.s32.totalorder %s72, %s75
      %p81 = scmp.eq.s32.totalorder %s15, 0
      %p82 = por %p80, %p81
      %p83 = scmp.ne.s32.totalorder %s72, %s75
      %p84 = scmp.eq.s32.totalorder %s20, 1
      %p85 = por %p83, %p84
      %p86 = scmp.ne.s32.totalorder %s75, %s76
      %p87 = scmp.eq.s32.totalorder %s20, 0
      %p88 = por %p86, %p87
      %p89 = scmp.ne.s32.totalorder %s75, %s76
      %p90 = scmp.eq.s32.totalorder %s21, 1
      %p91 = por %p89, %p90
      %p93 = scmp.ne.s32.totalorder %s76, %s92
      %p94 = scmp.eq.s32.totalorder %s21, 0
      %p95 = por %p93, %p94
      %s96 = ssub.s32 %s22, %s41
      %s97 = ssub.s32 %s23, %s37
      %s98 = sor.u32 %s96, %s97
      %s99 = ssub.s32 %s24, %s33
      %s100 = sor.u32 %s98, %s99
      %p101 = scmp.eq.s32.totalorder %s100, 0
      %s103 = sadd.s32 %s102, 1
      %s104 = scalar_select %p101, %s102, %s103
      %p107 = pneg %p101
      %p108 = scmp.eq.s32.totalorder %s15, 1
      %p109 = por %p107, %p108
      %p110 = scmp.ne.s32.totalorder %s102, %s105
      %p111 = scmp.eq.s32.totalorder %s15, 0
      %p112 = por %p110, %p111
      %p113 = scmp.ne.s32.totalorder %s102, %s105
      %p114 = scmp.eq.s32.totalorder %s20, 1
      %p115 = por %p113, %p114
      %p116 = scmp.ne.s32.totalorder %s105, %s106
      %p117 = scmp.eq.s32.totalorder %s20, 0
      %p118 = por %p116, %p117
      %p119 = scmp.ne.s32.totalorder %s105, %s106
      %p120 = scmp.eq.s32.totalorder %s21, 1
      %p121 = por %p119, %p120
      %p123 = scmp.ne.s32.totalorder %s106, %s122
      %p124 = scmp.eq.s32.totalorder %s21, 0
      %p125 = por %p123, %p124
      %p126 = scmp.le.s32.totalorder 1, %s15
      %p127 = scmp.lt.s32.totalorder %s15, 3
      %p128 = pnand %p126, %p127
      %p129 = pneg %p128
      // Predicated region
      $region9: #{tpu_custom_call.1} parent=5 // pred_check
        _
      $region10: #{tpu_custom_call.1} parent=5 // pred_check_branch
        %131 = sbr.rel (%p128) target = $region12
      $region11: #{tpu_custom_call.1} parent=5 // pred_region
        %s132 = ssub.s32 %s15, 1
        // Predicated region
        $region13: #{tpu_custom_call.1} parent=11 // pred_check
          %p133 = pneg %p60
        $region14: #{tpu_custom_call.1} parent=11 // pred_check_branch
          %135 = sbr.rel (%p133) target = $region16
        $region15: #{tpu_custom_call.1} parent=11 // pred_region
          %s136 = smul.u32 8, %s26
          %s138 = ssub.s32 512, 512
          %139 = vsyncadd [#allocation3], %s138
          %s140 = smul.addr %s136, 64
          %s141 = scalar_lea.hbm %s0, %s140
          %s142 = sshll.u32 [#allocation2], 4
          %s143 = int_to_ptr.vmem [resolvable:$true] %s142
          %148 = dma.hbm_to_vmem [thread:$0]  %s141, 512, %s143, [#allocation3], 64, 64, 4
        $region16: #{tpu_custom_call.1} parent=11 // pred_fallthru
          _
      $region12: #{tpu_custom_call.1} parent=5 // pred_fallthru
        _
      %p149 = scmp.lt.s32.totalorder %s15, 2
      // Predicated region
      $region17: #{tpu_custom_call.1} parent=5 // pred_check
        %p150 = pneg %p149
      $region18: #{tpu_custom_call.1} parent=5 // pred_check_branch
        %152 = sbr.rel (%p150) target = $region20
      $region19: #{tpu_custom_call.1} parent=5 // pred_region
        // Predicated region
        $region21: #{tpu_custom_call.1} parent=19 // pred_check
          %p153 = pneg %p82
        $region22: #{tpu_custom_call.1} parent=19 // pred_check_branch
          %155 = sbr.rel (%p153) target = $region24
        $region23: #{tpu_custom_call.1} parent=19 // pred_region
          %s156 = sand.u32 %s72, 1
          %s157 = scalar_lea.sflag [#allocation6], %s156
          %s158 = sand.u32 %s72, 1
          %s159 = smul.addr %s158, 12
          %s160 = scalar_lea.vmem [#allocation5], %s159
          %s162 = ssub.s32 192, 192
          %163 = vsyncadd %s157, %s162
          %s164 = smul.addr %s22, 3
          %s165 = sadd.s32 %s24, %s164
          %s166 = smul.addr %s165, 64
          %s167 = scalar_lea.hbm %s1, %s166
          %s168 = sshll.u32 %s160, 4
          %s169 = int_to_ptr.vmem [resolvable:$true] %s168
          %174 = dma.hbm_to_vmem [thread:$0]  %s167, 192, %s169, %s157, 64, 64, 4
        $region24: #{tpu_custom_call.1} parent=19 // pred_fallthru
          _
      $region20: #{tpu_custom_call.1} parent=5 // pred_fallthru
        _
      %p175 = scmp.le.s32.totalorder 1, %s15
      %p176 = scmp.lt.s32.totalorder %s15, 3
      %p177 = pnand %p175, %p176
      %p178 = pneg %p177
      // Predicated region
      $region25: #{tpu_custom_call.1} parent=5 // pred_check
        _
      $region26: #{tpu_custom_call.1} parent=5 // pred_check_branch
        %180 = sbr.rel (%p177) target = $region28
      $region27: #{tpu_custom_call.1} parent=5 // pred_region
        %s181 = ssub.s32 %s15, 1
        // Predicated region
        $region29: #{tpu_custom_call.1} parent=27 // pred_check
          %p182 = pneg %p60
        $region30: #{tpu_custom_call.1} parent=27 // pred_check_branch
          %184 = sbr.rel (%p182) target = $region32
        $region31: #{tpu_custom_call.1} parent=27 // pred_region
          %185 = dma.done [#allocation3], 512
        $region32: #{tpu_custom_call.1} parent=27 // pred_fallthru
          _
        %s186 = sand.u32 %s75, 1
        %s187 = scalar_lea.sflag [#allocation6], %s186
        %s188 = sand.u32 %s75, 1
        %s189 = smul.addr %s188, 12
        %s190 = scalar_lea.vmem [#allocation5], %s189
        // Predicated region
        $region33: #{tpu_custom_call.1} parent=27 // pred_check
          %p191 = pneg %p88
        $region34: #{tpu_custom_call.1} parent=27 // pred_check_branch
          %193 = sbr.rel (%p191) target = $region36
        $region35: #{tpu_custom_call.1} parent=27 // pred_region
          %194 = dma.done %s187, 192
        $region36: #{tpu_custom_call.1} parent=27 // pred_fallthru
          _
        %p195 = pneg %p60
        %p196 = pneg %p57
        %s197 = sand.u32 %s75, 1
        %s198 = scalar_lea.sflag [#allocation6], %s197
        %s199 = sand.u32 %s75, 1
        %s200 = smul.addr %s199, 12
        %s201 = scalar_lea.vmem [#allocation5], %s200
        %p202 = pneg %p88
        %p203 = pneg %p85
        %p204 = pneg %p118
        %p205 = pneg %p115
        %s206 = sand.u32 %s105, 1
        %s207 = scalar_lea.sflag [#allocation4], %s206
        %s208 = sand.u32 %s105, 1
        %s209 = smul.addr %s208, 32
        %s210 = scalar_lea.vmem [#allocation7], %s209
        %s211 = smul.u32 8, %s26
        %s212 = smul.u32 8, %s26
        %v214 = vld [vmem:[#allocation2] sm:$0xf]
        %v215 = vld [vmem:[#allocation2 + $0x4] sm:$0xf]
        %v216 = vld [vmem:[#allocation2 + $0x8] sm:$0xf]
        %v217 = vld [vmem:[#allocation2 + $0xc] sm:$0xf]
        %v218 = vld [vmem:[#allocation2 + $0x10] sm:$0xf]
        %v219 = vld [vmem:[#allocation2 + $0x14] sm:$0xf]
        %v220 = vld [vmem:[#allocation2 + $0x18] sm:$0xf]
        %v221 = vld [vmem:[#allocation2 + $0x1c] sm:$0xf]
        %v222 = vld [vmem:[%s190] sm:$0xf]
        %v223 = vld [vmem:[%s190 + $0x4] sm:$0xf]
        %v224 = vld [vmem:[%s190 + $0x8] sm:$0xf]
        %v233 = vunpack.c.l.b16 %v214
        %v234 = vunpack.c.l.b16 %v215
        %v235 = vunpack.c.l.b16 %v216
        %v236 = vunpack.c.l.b16 %v217
        %v237 = vunpack.c.l.b16 %v218
        %v238 = vunpack.c.l.b16 %v219
        %v239 = vunpack.c.l.b16 %v220
        %v240 = vunpack.c.l.b16 %v221
        %v241 = vpack.c.b16 %v234, %v233
        %v242 = vpack.c.b16 %v236, %v235
        %v243 = vpack.c.b16 %v238, %v237
        %v244 = vpack.c.b16 %v240, %v239
        %v248 = vunpack.c.l.b16 %v222
        %v249 = vunpack.c.l.b16 %v223
        %v250 = vunpack.c.l.b16 %v224
        %v251 = vpack.c.b16 %v249, %v248
        %v252 = vpack.c.b16 %v250, %v250
        %vm254 = vcmask 195584
        %v256 = vsel %vm254, %v241, 0
        %v259 = vsel %vm254, %v242, 0
        %v262 = vsel %vm254, %v243, 0
        %v265 = vsel %vm254, %v244, 0
        %vm267 = vcmask 1043456
        %v269 = vsel %vm267, %v252, 0
        %271 = vmatprep.subr.bf16.mxu0 0
        %272 = vmatpush1.bf16.msra.mxu0 %v251
        %273 = vmatprep.subr.bf16.mxu0 0
        %274 = vmatpush1.bf16.msra.mxu0 %v269
        %275 = vmatprep.subr.bf16.mxu0 0
        %276 = vmatpush1.bf16.msra.mxu0 0
        %277 = vmatprep.subr.bf16.mxu0 0
        %278 = vmatpush1.bf16.msra.mxu0 0
        %279 = vmatprep.subr.bf16.mxu0 0
        %280 = vmatpush1.bf16.msra.mxu0 0
        %281 = vmatprep.subr.bf16.mxu0 0
        %282 = vmatpush1.bf16.msra.mxu0 0
        %283 = vmatprep.subr.bf16.mxu0 0
        %284 = vmatpush1.bf16.msra.mxu0 0
        %285 = vmatprep.subr.bf16.mxu0 0
        %286 = vmatpush1.bf16.msra.mxu0 0
        %287 = vmatprep.subr.bf16.mxu0 0
        %288 = vmatpush1.bf16.msra.mxu0 0
        %289 = vmatprep.subr.bf16.mxu0 0
        %290 = vmatpush1.bf16.msra.mxu0 0
        %291 = vmatprep.subr.bf16.mxu0 0
        %292 = vmatpush1.bf16.msra.mxu0 0
        %293 = vmatprep.subr.bf16.mxu0 0
        %294 = vmatpush1.bf16.msra.mxu0 0
        %295 = vmatprep.subr.bf16.mxu0 0
        %296 = vmatpush1.bf16.msra.mxu0 0
        %297 = vmatprep.subr.bf16.mxu0 0
        %298 = vmatpush1.bf16.msra.mxu0 0
        %299 = vmatprep.subr.bf16.mxu0 0
        %300 = vmatpush1.bf16.msra.mxu0 0
        %301 = vmatprep.subr.bf16.mxu0 0
        %302 = vmatpush1.bf16.msra.mxu0 0
        %303 = vmatprep.mubr.bf16.mxu0 0
        %304 = vmatmul.mubr.bf16.gmra.mrb[0].mxu0 %v256
        %v305 = vpop.f32.mrb[0].mxu0
        %v306 = vadd.f32 0.0, %v305
        %v307 = vpop.f32.mrb[0].mxu0
        %v308 = vpop.f32.mrb[0].mxu0
        %v309 = vadd.f32 0.0, %v308
        %v310 = vpop.f32.mrb[0].mxu0
        %311 = vmatprep.mubr.bf16.mxu0 0
        %312 = vmatmul.mubr.bf16.gmra.mrb[0].mxu0 %v259
        %v313 = vpop.f32.mrb[0].mxu0
        %v314 = vadd.f32 0.0, %v313
        %v315 = vpop.f32.mrb[0].mxu0
        %v316 = vpop.f32.mrb[0].mxu0
        %v317 = vadd.f32 0.0, %v316
        %v318 = vpop.f32.mrb[0].mxu0
        %319 = vmatprep.mubr.bf16.mxu0 0
        %320 = vmatmul.mubr.bf16.gmra.mrb[0].mxu0 %v262
        %v321 = vpop.f32.mrb[0].mxu0
        %v322 = vadd.f32 0.0, %v321
        %v323 = vpop.f32.mrb[0].mxu0
        %v324 = vpop.f32.mrb[0].mxu0
        %v325 = vadd.f32 0.0, %v324
        %v326 = vpop.f32.mrb[0].mxu0
        %327 = vmatprep.mubr.bf16.mxu0 0
        %328 = vmatmul.mubr.bf16.gmra.mrb[0].mxu0 %v265
        %v329 = vpop.f32.mrb[0].mxu0
        %v330 = vadd.f32 0.0, %v329
        %v331 = vpop.f32.mrb[0].mxu0
        %v332 = vpop.f32.mrb[0].mxu0
        %v333 = vadd.f32 0.0, %v332
        %v334 = vpop.f32.mrb[0].mxu0
        %335 = vdwg.mxu0
        %v336 = vpack.c.bf16 %v309, %v306
        %v337 = vpack.c.bf16 %v317, %v314
        %v338 = vpack.c.bf16 %v325, %v322
        %v339 = vpack.c.bf16 %v333, %v330
        %v344 = vunpack.c.l.b16 %v336
        %v345 = vunpack.c.h.b16 %v336
        %v346 = vunpack.c.l.b16 %v337
        %v347 = vunpack.c.h.b16 %v337
        %v348 = vunpack.c.l.b16 %v338
        %v349 = vunpack.c.h.b16 %v338
        %v350 = vunpack.c.l.b16 %v339
        %v351 = vunpack.c.h.b16 %v339
        %v352 = vpack.c.b16 %v344, %v344
        %v353 = vpack.c.b16 %v345, %v345
        %v354 = vpack.c.b16 %v346, %v346
        %v355 = vpack.c.b16 %v347, %v347
        %v356 = vpack.c.b16 %v348, %v348
        %v357 = vpack.c.b16 %v349, %v349
        %v358 = vpack.c.b16 %v350, %v350
        %v359 = vpack.c.b16 %v351, %v351
        %vm368 = vcmask 494592
        %369 = vst.msk [vmem:[%s210] sm:$0xf] %vm368, %v352
        %370 = vst.msk [vmem:[%s210 + $0x4] sm:$0xf] %vm368, %v353
        %371 = vst.msk [vmem:[%s210 + $0x8] sm:$0xf] %vm368, %v354
        %372 = vst.msk [vmem:[%s210 + $0xc] sm:$0xf] %vm368, %v355
        %373 = vst.msk [vmem:[%s210 + $0x10] sm:$0xf] %vm368, %v356
        %374 = vst.msk [vmem:[%s210 + $0x14] sm:$0xf] %vm368, %v357
        %375 = vst.msk [vmem:[%s210 + $0x18] sm:$0xf] %vm368, %v358
        %376 = vst.msk [vmem:[%s210 + $0x1c] sm:$0xf] %vm368, %v359
        %s377 = sand.u32 %s105, 1
        %s378 = scalar_lea.sflag [#allocation4], %s377
        %s379 = sand.u32 %s105, 1
        %s380 = smul.addr %s379, 32
        %s381 = scalar_lea.vmem [#allocation7], %s380
        // Predicated region
        $region37: #{tpu_custom_call.1} parent=27 // pred_check
          %p382 = pneg %p115
        $region38: #{tpu_custom_call.1} parent=27 // pred_check_branch
          %384 = sbr.rel (%p382) target = $region40
        $region39: #{tpu_custom_call.1} parent=27 // pred_region
          %s385 = smul.u32 8, %s26
          %s387 = ssub.s32 512, 512
          %388 = vsyncadd %s378, %s387
          %s389 = sadd.s32 %s27, %s385
          %s390 = smul.addr %s25, 8
          %s391 = sadd.s32 %s389, %s390
          %s392 = smul.addr %s391, 64
          %s393 = scalar_lea.hbm %s2, %s392
          %s394 = sshll.u32 %s381, 4
          %s395 = int_to_ptr.vmem [resolvable:$true] %s394
          %400 = dma.vmem_to_hbm [thread:$0]  %s395, 512, %s393, %s378, 64, 64, 4
        $region40: #{tpu_custom_call.1} parent=27 // pred_fallthru
          _
      $region28: #{tpu_custom_call.1} parent=5 // pred_fallthru
        _
      %p401 = scmp.le.s32.totalorder 2, %s15
      // Predicated region
      $region41: #{tpu_custom_call.1} parent=5 // pred_check
        %p402 = pneg %p401
      $region42: #{tpu_custom_call.1} parent=5 // pred_check_branch
        %404 = sbr.rel (%p402) target = $region44
      $region43: #{tpu_custom_call.1} parent=5 // pred_region
        %s405 = ssub.s32 %s15, 2
        // Predicated region
        $region45: #{tpu_custom_call.1} parent=43 // pred_check
          %p406 = pneg %p121
        $region46: #{tpu_custom_call.1} parent=43 // pred_check_branch
          %408 = sbr.rel (%p406) target = $region48
        $region47: #{tpu_custom_call.1} parent=43 // pred_region
          %s409 = sand.u32 %s106, 1
          %s410 = scalar_lea.sflag [#allocation4], %s409
          %s411 = sand.u32 %s106, 1
          %s412 = smul.addr %s411, 32
          %s413 = scalar_lea.vmem [#allocation7], %s412
          %414 = dma.done %s410, 512
        $region48: #{tpu_custom_call.1} parent=43 // pred_fallthru
          _
      $region44: #{tpu_custom_call.1} parent=5 // pred_fallthru
        _
    $region6: #{tpu_custom_call.1} parent=1 // loop_footer
      %s19 = sadd.s32 1, %s15
    $region7: #{tpu_custom_call.1} parent=1 // loop_footer_branch
      %14 = sbr.rel target = $region3
    $region8: #{tpu_custom_call.1} parent=1 // loop_exit
      _
    %415 = vsyncpa [#allocation3], 1
    %s416 = scalar_lea.sflag [#allocation3], 1
    %417 = vsyncpa %s416, 1
    %418 = vsyncpa [#allocation6], 1
    %s419 = scalar_lea.sflag [#allocation6], 1
    %420 = vsyncpa %s419, 1
    %421 = vsyncpa [#allocation4], 1
    %s422 = scalar_lea.sflag [#allocation4], 1
    %423 = vsyncpa %s422, 1

</llo_original>
